<compile_context>
chip_gen: v5e
topology: v5e:2x2
jax: 0.10.0
libtpu: 0.0.40
codegen_flags: <defaults>
</compile_context>

<pallas_src>
import jax
import jax.numpy as jnp
from jax import lax
from jax.experimental import pallas as pl
from jax.experimental.pallas import tpu as pltpu

EPS = 1e-5


def _round_up(x, m):
    return ((x + m - 1) // m) * m


def _sublane_multiple(dtype):
    # Minimum sublane tile: 8 for 4-byte, 16 for 2-byte, 32 for 1-byte dtypes.
    return max(8, 32 // jnp.dtype(dtype).itemsize)


def _choose_tn(D):
    # Output-feature tile: full D when small / not 128-aligned, otherwise the
    # largest of {1024, 512, 256, 128} dividing D (bounds W-slab VMEM use).
    if D % 128 != 0 or D <= 1024:
        return D
    for tn in (1024, 512, 256, 128):
        if D % tn == 0:
            return tn
    return D


def simple_res_kernel(x_ref, wt_ref, g_ref, b_ref, o_ref):
    # x_ref : (tm, D)  input rows, native dtype, resident across the j axis
    # wt_ref: (D, tn)  W.T column slab, native dtype (MXU fast path)
    # g_ref : (1, D)   LayerNorm gamma (pre-cast to f32 in the wrapper)
    # b_ref : (1, D)   LayerNorm beta  (pre-cast to f32 in the wrapper)
    # o_ref : (tm, tn) output tile
    j = pl.program_id(1)
    tn = o_ref.shape[-1]

    x = x_ref[...]
    xf = x.astype(jnp.float32)

    # LayerNorm over the feature dim (biased variance, eps=1e-5 -> torch).
    mean = jnp.mean(xf, axis=-1, keepdims=True)
    xc = xf - mean
    var = jnp.mean(xc * xc, axis=-1, keepdims=True)
    xn = xc * lax.rsqrt(var + EPS)
    # Affine in f32, then back to native dtype so the MXU runs at full rate.
    h = (xn * g_ref[...] + b_ref[...]).astype(x.dtype)

    # Linear (no bias) on the j-th output-column slab; accumulate in f32.
    y = jnp.dot(h, wt_ref[...], preferred_element_type=jnp.float32)

    # Residual: matching column slice of the original (resident) input tile.
    col0 = pl.multiple_of(j * tn, tn)
    res = x_ref[:, pl.ds(col0, tn)].astype(jnp.float32)
    o_ref[...] = (y + res).astype(o_ref.dtype)


def simple_res(x, weight, gamma, beta, *, tm=256, tn=None):
    """y = LayerNorm(x) @ weight.T + x.

    x: (..., D); weight: (D, D) torch Linear layout (out_dim, in_dim);
    gamma/beta: (D,) LayerNorm affine parameters.
    """
    orig_shape = x.shape
    D = orig_shape[-1]
    x2 = x.reshape(-1, D)
    M = x2.shape[0]

    # Row tile: dtype-aligned, big enough to feed the MXU, never above padded M.
    sub = _sublane_multiple(x.dtype)
    tm = max(sub, min(_round_up(tm, sub), _round_up(M, sub)))
    Mp = _round_up(M, tm)
    if Mp != M:
        x2 = jnp.pad(x2, ((0, Mp - M), (0, 0)))

    if tn is None:
        tn = _choose_tn(D)
    assert D % tn == 0, "tn must divide D"

    wt = weight.T.astype(x.dtype)                  # (D, D) native dtype for the MXU
    g2 = gamma.reshape(1, D).astype(jnp.float32)   # cast once, outside the hot loop
    b2 = beta.reshape(1, D).astype(jnp.float32)

    grid = (Mp // tm, D // tn)

    itemsize = jnp.dtype(x.dtype).itemsize
    # Double-buffered footprint: x tile, W slab, out tile; plus gamma/beta.
    vmem_est = 2 * (tm * D + D * tn + tm * tn) * itemsize + 4 * D * 4
    vmem_limit = int(min(128 * 1024 * 1024,
                         max(16 * 1024 * 1024, 2 * vmem_est)))

    cost = pl.CostEstimate(
        flops=2 * Mp * D * D,
        transcendentals=0,
        bytes_accessed=(2 * Mp * D + D * D) * itemsize + 2 * D * 4,
    )

    out = pl.pallas_call(
        simple_res_kernel,
        out_shape=jax.ShapeDtypeStruct((Mp, D), x.dtype),
        grid_spec=pltpu.PrefetchScalarGridSpec(
            num_scalar_prefetch=0,
            grid=grid,
            in_specs=[
                pl.BlockSpec((tm, D), lambda i, j: (i, 0)),   # x rows (resident over j)
                pl.BlockSpec((D, tn), lambda i, j: (0, j)),   # W.T column slab
                pl.BlockSpec((1, D), lambda i, j: (0, 0)),    # gamma (f32)
                pl.BlockSpec((1, D), lambda i, j: (0, 0)),    # beta  (f32)
            ],
            out_specs=pl.BlockSpec((tm, tn), lambda i, j: (i, j)),
        ),
        compiler_params=pltpu.CompilerParams(
            dimension_semantics=("parallel", "parallel"),
            vmem_limit_bytes=vmem_limit,
        ),
        cost_estimate=cost,
    )(x2, wt, g2, b2)

    if Mp != M:
        out = out[:M]
    return out.reshape(orig_shape)


def simple_res_ref(x, weight, gamma, beta):
    # Pure-JAX reference mirroring the kernel's dtype handling (no-ops for f32).
    xf = x.astype(jnp.float32)
    mean = jnp.mean(xf, axis=-1, keepdims=True)
    var = jnp.mean((xf - mean) ** 2, axis=-1, keepdims=True)
    xn = (xf - mean) * lax.rsqrt(var + EPS)
    h = xn * gamma.astype(jnp.float32) + beta.astype(jnp.float32)
    h = h.astype(x.dtype).astype(jnp.float32)
    w = weight.T.astype(x.dtype).astype(jnp.float32)
    return (h @ w + xf).astype(x.dtype)


if __name__ == "__main__":
    key = jax.random.PRNGKey(0)

    def make_inputs(k, B, S, D, dtype):
        kx, kw, kg, kb = jax.random.split(k, 4)
        x = jax.random.normal(kx, (B, S, D), dtype=jnp.float32).astype(dtype)
        bound = 1.0 / (D ** 0.5)
        w = jax.random.uniform(kw, (D, D), minval=-bound, maxval=bound,
                               dtype=jnp.float32).astype(dtype)
        g = 1.0 + 0.01 * jax.random.normal(kg, (D,), dtype=jnp.float32)
        b = 0.01 * jax.random.normal(kb, (D,), dtype=jnp.float32)
        return x, w, g, b

    cases = [
        # (B, S, D, dtype, tm, tn, tol)
        (2, 8, 128, jnp.float32, 256, None, 2e-4),   # single tile
        (4, 96, 256, jnp.float32, 64, 128, 2e-4),    # multi row-tiles + 2 column slabs
        (3, 5, 256, jnp.float32, 64, None, 2e-4),    # ragged M -> padding path
        (2, 64, 256, jnp.bfloat16, 64, None, 2e-2),  # native bf16 MXU path
    ]
    keys = jax.random.split(key, len(cases))
    for (B, S, D, dtype, tm, tn, tol), k in zip(cases, keys):
        x, w, g, b = make_inputs(k, B, S, D, dtype)
        y = simple_res(x, w, g, b, tm=tm, tn=tn)
        jax.block_until_ready(y)
        y_ref = simple_res_ref(x, w, g, b)
        assert y.shape == x.shape
        assert jnp.allclose(y.astype(jnp.float32), y_ref.astype(jnp.float32),
                            atol=tol, rtol=tol), f"mismatch for {(B, S, D, dtype)}"

    print("KERNEL_OK")
</pallas_src>

<mosaic_0001>
module attributes {stable_mosaic.version = 11 : i64} {
  func.func @simple_res_kernel(%arg0: i32, %arg1: i32, %arg2: memref<16x128xf32, #tpu.memory_space<vmem>>, %arg3: memref<128x128xf32, #tpu.memory_space<vmem>>, %arg4: memref<1x128xf32, #tpu.memory_space<vmem>>, %arg5: memref<1x128xf32, #tpu.memory_space<vmem>>, %arg6: memref<16x128xf32, #tpu.memory_space<vmem>>) attributes {dimension_semantics = [#tpu.dimension_semantics<parallel>, #tpu.dimension_semantics<parallel>], iteration_bounds = array<i64: 1, 1>, scalar_prefetch = 0 : i64, scratch_operands = 0 : i64, tpu.core_type = #tpu.core_type<tc>, window_params = [{transform_indices = @transform_0, window_bounds = array<i64: 16, 128>}, {transform_indices = @transform_1, window_bounds = array<i64: 128, 128>}, {pipeline_mode = #tpu.pipeline_mode<synchronous>, transform_indices = @transform_2, window_bounds = array<i64: 1, 128>}, {pipeline_mode = #tpu.pipeline_mode<synchronous>, transform_indices = @transform_3, window_bounds = array<i64: 1, 128>}, {transform_indices = @transform_4, window_bounds = array<i64: 16, 128>}]} {
    %c0 = arith.constant 0 : index
    %c0_0 = arith.constant 0 : index
    %0 = vector.load %arg2[%c0, %c0_0] : memref<16x128xf32, #tpu.memory_space<vmem>>, vector<16x128xf32>
    %cst = arith.constant dense<0.000000e+00> : vector<16xf32>
    %1 = vector.multi_reduction <add>, %0, %cst [1] : vector<16x128xf32> to vector<16xf32>
    %2 = vector.shape_cast %1 : vector<16xf32> to vector<16x1xf32>
    %cst_1 = arith.constant 1.280000e+02 : f32
    %3 = vector.broadcast %cst_1 : f32 to vector<16x1xf32>
    %4 = arith.divf %2, %3 : vector<16x1xf32>
    %5 = vector.broadcast %4 : vector<16x1xf32> to vector<16x128xf32>
    %6 = arith.subf %0, %5 : vector<16x128xf32>
    %7 = arith.mulf %6, %6 : vector<16x128xf32>
    %cst_2 = arith.constant dense<0.000000e+00> : vector<16xf32>
    %8 = vector.multi_reduction <add>, %7, %cst_2 [1] : vector<16x128xf32> to vector<16xf32>
    %9 = vector.shape_cast %8 : vector<16xf32> to vector<16x1xf32>
    %cst_3 = arith.constant 1.280000e+02 : f32
    %10 = vector.broadcast %cst_3 : f32 to vector<16x1xf32>
    %11 = arith.divf %9, %10 : vector<16x1xf32>
    %cst_4 = arith.constant 9.99999974E-6 : f32
    %12 = vector.broadcast %cst_4 : f32 to vector<16x1xf32>
    %13 = arith.addf %11, %12 : vector<16x1xf32>
    %14 = math.rsqrt %13 : vector<16x1xf32>
    %15 = vector.broadcast %14 : vector<16x1xf32> to vector<16x128xf32>
    %16 = arith.mulf %6, %15 : vector<16x128xf32>
    %c0_5 = arith.constant 0 : index
    %c0_6 = arith.constant 0 : index
    %17 = vector.load %arg4[%c0_5, %c0_6] : memref<1x128xf32, #tpu.memory_space<vmem>>, vector<1x128xf32>
    %18 = vector.broadcast %17 : vector<1x128xf32> to vector<16x128xf32>
    %19 = arith.mulf %16, %18 : vector<16x128xf32>
    %c0_7 = arith.constant 0 : index
    %c0_8 = arith.constant 0 : index
    %20 = vector.load %arg5[%c0_7, %c0_8] : memref<1x128xf32, #tpu.memory_space<vmem>>, vector<1x128xf32>
    %21 = vector.broadcast %20 : vector<1x128xf32> to vector<16x128xf32>
    %22 = arith.addf %19, %21 : vector<16x128xf32>
    %c0_9 = arith.constant 0 : index
    %c0_10 = arith.constant 0 : index
    %23 = vector.load %arg3[%c0_9, %c0_10] : memref<128x128xf32, #tpu.memory_space<vmem>>, vector<128x128xf32>
    %cst_11 = arith.constant dense<0.000000e+00> : vector<16x128xf32>
    %24 = tpu.matmul %22, %23, %cst_11 {dimension_numbers = #tpu.dot_dimension_numbers<[1], [0], [0], [1], [0, 0, 1, 1], [], []>} : vector<16x128xf32>, vector<128x128xf32>, vector<16x128xf32> -> vector<16x128xf32>
    %c128_i32 = arith.constant 128 : i32
    %25 = arith.muli %arg1, %c128_i32 : i32
    %26 = tpu.assume_multiple %25, 128 : i32
    %c0_12 = arith.constant 0 : index
    %27 = arith.index_cast %26 : i32 to index
    %28 = vector.load %arg2[%c0_12, %27] : memref<16x128xf32, #tpu.memory_space<vmem>>, vector<16x128xf32>
    %29 = arith.addf %24, %28 : vector<16x128xf32>
    %c0_13 = arith.constant 0 : index
    %c0_14 = arith.constant 0 : index
    %30 = vector.load %arg6[%c0_13, %c0_14] : memref<16x128xf32, #tpu.memory_space<vmem>>, vector<16x128xf32>
    tpu.vector_store %arg6[%c0_13, %c0_14], %29 {strides = array<i32>} : memref<16x128xf32, #tpu.memory_space<vmem>>, vector<16x128xf32>,
    return
  }
  func.func @transform_0(%arg0: i32, %arg1: i32) -> (i32, i32) {
    %c0_i32 = arith.constant 0 : i32
    %c0_i32_0 = arith.constant 0 : i32
    return %arg0, %c0_i32 : i32, i32
  }
  func.func @transform_1(%arg0: i32, %arg1: i32) -> (i32, i32) {
    %c0_i32 = arith.constant 0 : i32
    %c0_i32_0 = arith.constant 0 : i32
    return %c0_i32, %arg1 : i32, i32
  }
  func.func @transform_2(%arg0: i32, %arg1: i32) -> (i32, i32) {
    %c0_i32 = arith.constant 0 : i32
    %c0_i32_0 = arith.constant 0 : i32
    %c0_i32_1 = arith.constant 0 : i32
    return %c0_i32, %c0_i32_0 : i32, i32
  }
  func.func @transform_3(%arg0: i32, %arg1: i32) -> (i32, i32) {
    %c0_i32 = arith.constant 0 : i32
    %c0_i32_0 = arith.constant 0 : i32
    %c0_i32_1 = arith.constant 0 : i32
    return %c0_i32, %c0_i32_0 : i32, i32
  }
  func.func @transform_4(%arg0: i32, %arg1: i32) -> (i32, i32) {
    %c0_i32 = arith.constant 0 : i32
    return %arg0, %arg1 : i32, i32
  }
}

</mosaic_0001>

<llo_original>
// kernel: tpu_custom_call.1
$region0: #{tpu_custom_call.1}
  #allocation0 [shape = 'u32[]', space=smem, size = 0x4, offset = 0x4, fixed_abs, tag = 'smem constant byte address 0x4 - core index']
  #allocation1 [shape = 'u32[72,128]{1,0:T(1,128)}', space=vmem, size = 0x9000, scoped, tag = 'internal scratch']
  %s0 = inlined_call_operand.hbm [shape: f32[16,128], index: 0, kind: input, shape index: {}]
  %s1 = inlined_call_operand.hbm [shape: f32[128,128], index: 1, kind: input, shape index: {}]
  %s2 = inlined_call_operand.vmem [shape: f32[1,128], index: 2, kind: input, shape index: {}]
  %s3 = inlined_call_operand.vmem [shape: f32[1,128], index: 3, kind: input, shape index: {}]
  %s4 = inlined_call_operand.hbm [shape: f32[16,128], index: 4, kind: output, shape index: {}]
  %s5 = sld [smem:[#allocation0]]
  $region34: #{tpu_custom_call.1} parent=0
    _
  %s7 = ssub.s32 1, %s5
  %s8 = scalar_select 0, %s7, %s5
  $region1: #{tpu_custom_call.1} parent=0
    #allocation2 [shape = 'u8[8192]{0}', space=vmem, size = 0x2000, scoped, tag = 'input window, operand 0, single buffered']
    #allocation3 [shape = 's32[1]{0}', space=sflag, size = 0x4, scoped, tag = 'scoped memory for tpu_custom_call.1']
    #allocation4 [shape = 's32[1]{0}', space=sflag, size = 0x4, scoped, tag = 'scoped memory for tpu_custom_call.1']
    #allocation5 [shape = 'u8[65536]{0}', space=vmem, size = 0x10000, scoped, tag = 'input window, operand 1, single buffered']
    #allocation6 [shape = 's32[1]{0}', space=sflag, size = 0x4, scoped, tag = 'scoped memory for tpu_custom_call.1']
    #allocation7 [shape = 'u8[8192]{0}', space=vmem, size = 0x2000, scoped, tag = 'output window, operand 0, single buffered']
    %9 = vsyncpa [#allocation3], 0
    %10 = vsyncpa [#allocation6], 0
    %11 = vsyncpa [#allocation4], 0
    // Predicated region
    $region2: #{tpu_custom_call.1} parent=1 // pred_check
      _
    $region3: #{tpu_custom_call.1} parent=1 // pred_check_branch
      %13 = sbr.rel (0) target = $region5
    $region4: #{tpu_custom_call.1} parent=1 // pred_region
      %15 = vsyncadd [#allocation3], 0
      %s16 = sshll.u32 %s0, 4
      %s17 = int_to_ptr.hbm [resolvable:$true] %s16
      %s18 = sshll.u32 [#allocation2], 4
      %s19 = int_to_ptr.vmem [resolvable:$true] %s18
      %24 = dma.hbm_to_vmem [thread:$0]  %s17, 256, %s19, [#allocation3], 128, 128, 8
    $region5: #{tpu_custom_call.1} parent=1 // pred_fallthru
      _
    // Predicated region
    $region6: #{tpu_custom_call.1} parent=1 // pred_check
      _
    $region7: #{tpu_custom_call.1} parent=1 // pred_check_branch
      %26 = sbr.rel (0) target = $region9
    $region8: #{tpu_custom_call.1} parent=1 // pred_region
      %28 = vsyncadd [#allocation6], 0
      %s29 = sshll.u32 %s1, 4
      %s30 = int_to_ptr.hbm [resolvable:$true] %s29
      %s31 = sshll.u32 [#allocation5], 4
      %s32 = int_to_ptr.vmem [resolvable:$true] %s31
      %37 = dma.hbm_to_vmem [thread:$0]  %s30, 2048, %s32, [#allocation6], 128, 128, 8
    $region9: #{tpu_custom_call.1} parent=1 // pred_fallthru
      _
    // Predicated region
    $region10: #{tpu_custom_call.1} parent=1 // pred_check
      _
    $region11: #{tpu_custom_call.1} parent=1 // pred_check_branch
      %39 = sbr.rel (0) target = $region13
    $region12: #{tpu_custom_call.1} parent=1 // pred_region
      _
    $region13: #{tpu_custom_call.1} parent=1 // pred_fallthru
      _
    // Predicated region
    $region14: #{tpu_custom_call.1} parent=1 // pred_check
      _
    $region15: #{tpu_custom_call.1} parent=1 // pred_check_branch
      %41 = sbr.rel (0) target = $region17
    $region16: #{tpu_custom_call.1} parent=1 // pred_region
      _
    $region17: #{tpu_custom_call.1} parent=1 // pred_fallthru
      _
    // Predicated region
    $region18: #{tpu_custom_call.1} parent=1 // pred_check
      _
    $region19: #{tpu_custom_call.1} parent=1 // pred_check_branch
      %43 = sbr.rel (0) target = $region21
    $region20: #{tpu_custom_call.1} parent=1 // pred_region
      %45 = dma.done [#allocation3], 256
    $region21: #{tpu_custom_call.1} parent=1 // pred_fallthru
      _
    // Predicated region
    $region22: #{tpu_custom_call.1} parent=1 // pred_check
      _
    $region23: #{tpu_custom_call.1} parent=1 // pred_check_branch
      %47 = sbr.rel (0) target = $region25
    $region24: #{tpu_custom_call.1} parent=1 // pred_region
      %49 = dma.done [#allocation6], 2048
    $region25: #{tpu_custom_call.1} parent=1 // pred_fallthru
      _
    %v50 = vld [vmem:[#allocation2] sm:$0xff]
    %v51 = vld [vmem:[#allocation2 + $0x8] sm:$0xff]
    %52 = vadd.xlane.f32.xlu0 %v50
    %v53 = vpop.xlane.xlu0 %52
    %54 = vadd.xlane.f32.xlu0 %v51
    %v55 = vpop.xlane.xlu0 %54
    %v56 = vrcp.pop 128.0
    %v57 = vmul.f32 128.0, %v56
    %v58 = vsub.f32 1.0, %v57
    %v59 = vmul.f32 %v56, %v58
    %v60 = vadd.f32 %v56, %v59
    %vm61 = vweird.f32 %v56
    %v62 = vsel %vm61, %v56, %v60
    %v63 = vmul.f32 %v53, %v62
    %v64 = vmul.f32 %v55, %v62
    %v65 = vsub.f32 %v50, %v63
    %v66 = vsub.f32 %v51, %v64
    %v67 = vmul.f32 %v65, %v65
    %v68 = vmul.f32 %v66, %v66
    %69 = vadd.xlane.f32.xlu0 %v67
    %v70 = vpop.xlane.xlu0 %69
    %71 = vadd.xlane.f32.xlu0 %v68
    %v72 = vpop.xlane.xlu0 %71
    %v73 = vmul.f32 %v70, %v62
    %v74 = vmul.f32 %v72, %v62
    %v75 = vadd.f32 %v73, 1e-05
    %v76 = vadd.f32 %v74, 1e-05
    %v77 = vrsqrt.pop %v75
    %v78 = vmul.f32 %v77, %v75
    %v79 = vmul.f32 %v78, %v77
    %v80 = vmul.f32 0.5, %v79
    %v81 = vsub.f32 1.5, %v80
    %v82 = vmul.f32 %v77, %v81
    %vm83 = vweird.f32 %v75
    %vm84 = vweird.f32 %v77
    %vm85 = vmor %vm83, %vm84
    %v86 = vsel %vm85, %v77, %v82
    %v87 = vrsqrt.pop %v76
    %v88 = vmul.f32 %v87, %v76
    %v89 = vmul.f32 %v88, %v87
    %v90 = vmul.f32 0.5, %v89
    %v91 = vsub.f32 1.5, %v90
    %v92 = vmul.f32 %v87, %v91
    %vm93 = vweird.f32 %v76
    %vm94 = vweird.f32 %v87
    %vm95 = vmor %vm93, %vm94
    %v96 = vsel %vm95, %v87, %v92
    %v97 = vmul.f32 %v65, %v86
    %v98 = vmul.f32 %v66, %v96
    %v99 = vld [vmem:[%s2] sm:$0x1]
    %v101 = vperm.slane %v99, 0
    %v103 = vmul.f32 %v97, %v101
    %v104 = vmul.f32 %v98, %v101
    %v105 = vld [vmem:[%s3] sm:$0x1]
    %v107 = vperm.slane %v105, 0
    %v109 = vadd.f32 %v103, %v107
    %v110 = vadd.f32 %v104, %v107
    %v111 = vld [vmem:[#allocation5] sm:$0xff]
    %v112 = vld [vmem:[#allocation5 + $0x8] sm:$0xff]
    %v113 = vld [vmem:[#allocation5 + $0x10] sm:$0xff]
    %v114 = vld [vmem:[#allocation5 + $0x18] sm:$0xff]
    %v115 = vld [vmem:[#allocation5 + $0x20] sm:$0xff]
    %v116 = vld [vmem:[#allocation5 + $0x28] sm:$0xff]
    %v117 = vld [vmem:[#allocation5 + $0x30] sm:$0xff]
    %v118 = vld [vmem:[#allocation5 + $0x38] sm:$0xff]
    %v119 = vld [vmem:[#allocation5 + $0x40] sm:$0xff]
    %v120 = vld [vmem:[#allocation5 + $0x48] sm:$0xff]
    %v121 = vld [vmem:[#allocation5 + $0x50] sm:$0xff]
    %v122 = vld [vmem:[#allocation5 + $0x58] sm:$0xff]
    %v123 = vld [vmem:[#allocation5 + $0x60] sm:$0xff]
    %v124 = vld [vmem:[#allocation5 + $0x68] sm:$0xff]
    %v125 = vld [vmem:[#allocation5 + $0x70] sm:$0xff]
    %v126 = vld [vmem:[#allocation5 + $0x78] sm:$0xff]
    %s127 = smul.u32 0, 128
    %s128 = sshra.s32 %s127, 7
    %s129 = sand.u32 %s127, 127
    %s130 = scalar_lea.vmem [#allocation2], %s128
    %v131 = vld [vmem:[%s130] sm:$0xff]
    %v132 = vld [vmem:[%s130 + $0x8] sm:$0xff]
    %133 = vmatpush.msra.mxu0 %v126
    %134 = vmatpush.msra.mxu0 %v125
    %135 = vmatpush.msra.mxu0 %v124
    %136 = vmatpush.msra.mxu0 %v123
    %137 = vmatpush.msra.mxu0 %v122
    %138 = vmatpush.msra.mxu0 %v121
    %139 = vmatpush.msra.mxu0 %v120
    %140 = vmatpush.msra.mxu0 %v119
    %141 = vmatpush.msra.mxu0 %v118
    %142 = vmatpush.msra.mxu0 %v117
    %143 = vmatpush.msra.mxu0 %v116
    %144 = vmatpush.msra.mxu0 %v115
    %145 = vmatpush.msra.mxu0 %v114
    %146 = vmatpush.msra.mxu0 %v113
    %147 = vmatpush.msra.mxu0 %v112
    %148 = vmatpush.msra.mxu0 %v111
    %149 = vmatmul.f32.gmra.mxu0 %v109
    %v150 = vpop.f32.mrf.mxu0
    %v151 = vadd.f32 %v131, %v150
    %152 = vmatmul.f32.gmra.mxu0 %v110
    %v153 = vpop.f32.mrf.mxu0
    %v154 = vadd.f32 %v132, %v153
    %155 = vdwg.mxu0
    %156 = vst [vmem:[#allocation7] sm:$0xff] %v151
    %157 = vst [vmem:[#allocation7 + $0x8] sm:$0xff] %v154
    // Predicated region
    $region26: #{tpu_custom_call.1} parent=1 // pred_check
      _
    $region27: #{tpu_custom_call.1} parent=1 // pred_check_branch
      %159 = sbr.rel (0) target = $region29
    $region28: #{tpu_custom_call.1} parent=1 // pred_region
      %161 = vsyncadd [#allocation4], 0
      %s162 = sshll.u32 [#allocation7], 4
      %s163 = int_to_ptr.vmem [resolvable:$true] %s162
      %s164 = sshll.u32 %s4, 4
      %s165 = int_to_ptr.hbm [resolvable:$true] %s164
      %170 = dma.vmem_to_hbm [thread:$0]  %s163, 256, %s165, [#allocation4], 128, 128, 8
    $region29: #{tpu_custom_call.1} parent=1 // pred_fallthru
      _
    // Predicated region
    $region30: #{tpu_custom_call.1} parent=1 // pred_check
      _
    $region31: #{tpu_custom_call.1} parent=1 // pred_check_branch
      %172 = sbr.rel (0) target = $region33
    $region32: #{tpu_custom_call.1} parent=1 // pred_region
      %174 = dma.done [#allocation4], 256
    $region33: #{tpu_custom_call.1} parent=1 // pred_fallthru
      _
    %175 = vsyncpa [#allocation3], 1
    %176 = vsyncpa [#allocation6], 1
    %177 = vsyncpa [#allocation4], 1

</llo_original>
